<compile_context>
chip_gen: v6e
topology: v6e:2x2x1
jax: 0.10.0
libtpu: 0.0.40
codegen_flags: <defaults>
</compile_context>

<pallas_src>
import functools
import math

import jax
import jax.numpy as jnp
from jax.experimental import pallas as pl
from jax.experimental.pallas import tpu as pltpu


# ---------------------------------------------------------------------------
# Kernel: one GraphConvolution layer  out = [leaky_relu](adj @ (x @ W))
# ---------------------------------------------------------------------------
def _graph_conv_kernel(x_ref, adj_ref, w_ref, out_ref, sup_ref, *,
                       negative_slope):
    # x_ref   : (Bt, Np, Fin)   full node set of this batch block (grid-invariant over t)
    # adj_ref : (Bt, TN, Np)    one row tile of the adjacency per grid step
    # w_ref   : (Fin, Fout)     grid-invariant weights
    # out_ref : (Bt, TN, Fout)
    # sup_ref : VMEM scratch (Bt, Np, Fout) -- support = x @ W, reused by all row tiles
    t = pl.program_id(1)

    @pl.when(t == 0)
    def _compute_support():
        bt, np_, fin = x_ref.shape
        fout = w_ref.shape[1]
        # Fold batch into the M dimension: one big MXU matmul.
        sup = jnp.dot(
            x_ref[...].reshape(bt * np_, fin),
            w_ref[...],
            preferred_element_type=jnp.float32,
        )
        sup_ref[...] = sup.reshape(bt, np_, fout).astype(sup_ref.dtype)

    # Row-tiled adjacency matmul (batched): (Bt, TN, Np) @ (Bt, Np, Fout)
    out = jnp.einsum(
        "bij,bjf->bif",
        adj_ref[...],
        sup_ref[...],
        preferred_element_type=jnp.float32,
    )
    if negative_slope is not None:
        out = jnp.where(out >= 0, out, negative_slope * out)
    out_ref[...] = out.astype(out_ref.dtype)


# ---------------------------------------------------------------------------
# Tile-size / VMEM budgeting helpers
# ---------------------------------------------------------------------------
def _round_up(x, m):
    return (x + m - 1) // m * m


def _pad_to(x, shape, dtype):
    pads = [(0, t - s) for s, t in zip(x.shape, shape)]
    x = x.astype(dtype)
    if any(p[1] for p in pads):
        x = jnp.pad(x, pads)
    return x


def _choose_row_tile(np_, itemsize, budget=24 << 20):
    """Largest multiple-of-128 divisor of Np whose double-buffered adj row
    tile (per batch element) fits in `budget` bytes."""
    best = 128
    k = np_ // 128
    for d in range(1, k + 1):
        if k % d:
            continue
        tn = 128 * d
        if 2 * tn * np_ * itemsize <= budget:
            best = max(best, tn)
    return best


def _layer_footprint(bt, np_, tn, fin, fout, e_in, e_out):
    return (2 * bt * np_ * fin * e_in        # x block (double-buffered)
            + 2 * bt * tn * np_ * e_in       # adj row tile (double-buffered)
            + 2 * fin * fout * e_in          # weights
            + 2 * bt * tn * fout * e_out     # output tile (double-buffered)
            + bt * np_ * fout * e_in)        # support scratch


def _choose_batch_block(b, np_, tn, fin, fout, e_in, e_out, budget=40 << 20):
    for bt in range(b, 0, -1):
        if b % bt:
            continue
        if _layer_footprint(bt, np_, tn, fin, fout, e_in, e_out) <= budget:
            return bt
    return 1


# ---------------------------------------------------------------------------
# One GraphConvolution layer via pallas_call
# ---------------------------------------------------------------------------
def _graph_conv_layer(x, adj, w, *, negative_slope, out_dtype):
    b, np_, fin = x.shape
    fout = w.shape[1]
    e_in = jnp.dtype(x.dtype).itemsize
    e_out = jnp.dtype(out_dtype).itemsize

    tn = _choose_row_tile(np_, e_in)
    bt = _choose_batch_block(b, np_, tn, fin, fout, e_in, e_out)

    est = _layer_footprint(bt, np_, tn, fin, fout, e_in, e_out) + (2 << 20)
    # Explicit scoped-VMEM limit: at least the v6e/v7x default (32 MiB),
    # never above v7x physical VMEM (64 MiB).
    vmem_limit = int(min(64 << 20, max(32 << 20, 2 * est)))

    grid = (b // bt, np_ // tn)
    kernel = functools.partial(_graph_conv_kernel,
                               negative_slope=negative_slope)

    return pl.pallas_call(
        kernel,
        out_shape=jax.ShapeDtypeStruct((b, np_, fout), out_dtype),
        grid_spec=pltpu.PrefetchScalarGridSpec(
            num_scalar_prefetch=0,
            grid=grid,
            in_specs=[
                # Full node set per batch block; invariant over the row-tile axis.
                pl.BlockSpec((bt, np_, fin), lambda bb, t: (bb, 0, 0)),
                # One adjacency row tile per grid step.
                pl.BlockSpec((bt, tn, np_), lambda bb, t: (bb, t, 0)),
                # Grid-invariant weights.
                pl.BlockSpec((fin, fout), lambda bb, t: (0, 0)),
            ],
            out_specs=pl.BlockSpec((bt, tn, fout), lambda bb, t: (bb, t, 0)),
            scratch_shapes=[pltpu.VMEM((bt, np_, fout), x.dtype)],
        ),
        compiler_params=pltpu.CompilerParams(
            # Batch blocks shard across TensorCores; row tiles stay sequential
            # because they reuse the support scratch computed at t == 0.
            dimension_semantics=("parallel", "arbitrary"),
            vmem_limit_bytes=vmem_limit,
        ),
    )(x, adj, w)


# ---------------------------------------------------------------------------
# Full GCN_block
# ---------------------------------------------------------------------------
def gcn_block(inp, adj, w1, w2, *, negative_slope=0.2, compute_dtype=None):
    """Two-layer GCN block.

    inp : [B, N, F_in]
    adj : [B, N, N]
    w1  : [F_in, F_mid]
    w2  : [F_mid, F_out]
    compute_dtype : optional matmul-operand dtype (e.g. jnp.bfloat16 on
        v6e/v7x); accumulation is always f32, output dtype matches `inp`.
    returns [B, N, F_out]
    """
    b, n, f_in = inp.shape
    f_mid = w1.shape[1]
    f_out = w2.shape[1]
    assert adj.shape == (b, n, n)
    assert w1.shape == (f_in, f_mid)
    assert w2.shape == (f_mid, f_out)

    out_dtype = inp.dtype
    cdt = jnp.dtype(compute_dtype) if compute_dtype is not None else jnp.dtype(out_dtype)

    # Pad nodes & features to lane-friendly multiples of 128 (zero padding is
    # exact for this computation).
    np_ = _round_up(n, 128)
    fip = _round_up(f_in, 128)
    fmp = _round_up(f_mid, 128)
    fop = _round_up(f_out, 128)

    x_p = _pad_to(inp, (b, np_, fip), cdt)
    adj_p = _pad_to(adj, (b, np_, np_), cdt)
    w1_p = _pad_to(w1, (fip, fmp), cdt)
    w2_p = _pad_to(w2, (fmp, fop), cdt)

    # Layer 1 (+ LeakyReLU).  Intermediate stays in compute dtype so layer 2
    # reads narrow operands from HBM when compute_dtype is bf16.
    h = _graph_conv_layer(x_p, adj_p, w1_p,
                          negative_slope=negative_slope, out_dtype=cdt)
    # Layer 2 (no activation), accumulate/emit in the output dtype.
    out = _graph_conv_layer(h, adj_p, w2_p,
                            negative_slope=None, out_dtype=out_dtype)
    return out[:, :n, :f_out]


def gcn_block_ref(inp, adj, w1, w2, negative_slope=0.2):
    """Pure-JAX reference matching the PyTorch module."""
    h = jnp.matmul(adj, jnp.matmul(inp, w1))
    h = jnp.where(h >= 0, h, negative_slope * h)
    return jnp.matmul(adj, jnp.matmul(h, w2))


if __name__ == "__main__":
    # Small deterministic problem.
    B, N = 2, 16
    F_in, F_mid, F_out = 32, 64, 32

    key = jax.random.PRNGKey(0)
    k_x, k_adj, k_w1, k_w2 = jax.random.split(key, 4)

    inp = jax.random.normal(k_x, (B, N, F_in), dtype=jnp.float32)

    # Symmetric, row-normalized adjacency (deterministic).
    a = jax.random.uniform(k_adj, (B, N, N), dtype=jnp.float32)
    adj = 0.5 * (a + jnp.swapaxes(a, -1, -2))
    adj = adj / jnp.sum(adj, axis=-1, keepdims=True)

    # Parameter init mirroring GraphConvolution.reset_parameters:
    # uniform(-stdv, stdv) with stdv = 1/sqrt(out_features).
    stdv1 = 1.0 / math.sqrt(F_mid)
    stdv2 = 1.0 / math.sqrt(F_out)
    w1 = jax.random.uniform(k_w1, (F_in, F_mid), dtype=jnp.float32,
                            minval=-stdv1, maxval=stdv1)
    w2 = jax.random.uniform(k_w2, (F_mid, F_out), dtype=jnp.float32,
                            minval=-stdv2, maxval=stdv2)

    ref = gcn_block_ref(inp, adj, w1, w2)

    # Exact f32 path.
    out = gcn_block(inp, adj, w1, w2)
    out = jax.block_until_ready(out)
    assert out.shape == (B, N, F_out)
    assert jnp.allclose(out, ref, atol=1e-5, rtol=1e-5), "f32 mismatch vs reference"

    # bf16-operand / f32-accumulate path (MXU-peak friendly on v6e/v7x).
    out_bf16 = gcn_block(inp, adj, w1, w2, compute_dtype=jnp.bfloat16)
    out_bf16 = jax.block_until_ready(out_bf16)
    assert out_bf16.shape == (B, N, F_out)
    assert jnp.allclose(out_bf16, ref, atol=5e-2, rtol=5e-2), "bf16 mismatch vs reference"

    print("KERNEL_OK")
</pallas_src>

<mosaic_0001>
module attributes {stable_mosaic.version = 11 : i64} {
  func.func @_graph_conv_kernel(%arg0: i32, %arg1: i32, %arg2: memref<2x128x128xf32, #tpu.memory_space<vmem>>, %arg3: memref<2x128x128xf32, #tpu.memory_space<vmem>>, %arg4: memref<128x128xf32, #tpu.memory_space<vmem>>, %arg5: memref<2x128x128xf32, #tpu.memory_space<vmem>>, %arg6: memref<2x128x128xf32, #tpu.memory_space<vmem>>) attributes {dimension_semantics = [#tpu.dimension_semantics<parallel>, #tpu.dimension_semantics<arbitrary>], iteration_bounds = array<i64: 1, 1>, scalar_prefetch = 0 : i64, scratch_operands = 1 : i64, tpu.core_type = #tpu.core_type<tc>, window_params = [{transform_indices = @transform_0, window_bounds = array<i64: 2, 128, 128>}, {transform_indices = @transform_1, window_bounds = array<i64: 2, 128, 128>}, {pipeline_mode = #tpu.pipeline_mode<synchronous>, transform_indices = @transform_2, window_bounds = array<i64: 128, 128>}, {transform_indices = @transform_3, window_bounds = array<i64: 2, 128, 128>}]} {
    %c0_i32 = arith.constant 0 : i32
    %0 = arith.cmpi eq, %arg1, %c0_i32 : i32
    %1 = arith.extui %0 : i1 to i32
    %c0_i32_0 = arith.constant 0 : i32
    %2 = arith.cmpi ne, %1, %c0_i32_0 : i32
    scf.if %2 {
      %c0_11 = arith.constant 0 : index
      %c0_12 = arith.constant 0 : index
      %c0_13 = arith.constant 0 : index
      %12 = vector.load %arg2[%c0_11, %c0_12, %c0_13] : memref<2x128x128xf32, #tpu.memory_space<vmem>>, vector<2x128x128xf32>
      %13 = vector.shape_cast %12 : vector<2x128x128xf32> to vector<256x128xf32>
      %c0_14 = arith.constant 0 : index
      %c0_15 = arith.constant 0 : index
      %14 = vector.load %arg4[%c0_14, %c0_15] : memref<128x128xf32, #tpu.memory_space<vmem>>, vector<128x128xf32>
      %cst_16 = arith.constant dense<0.000000e+00> : vector<256x128xf32>
      %15 = tpu.matmul %13, %14, %cst_16 {dimension_numbers = #tpu.dot_dimension_numbers<[1], [0], [0], [1], [0, 0, 1, 1], [], []>} : vector<256x128xf32>, vector<128x128xf32>, vector<256x128xf32> -> vector<256x128xf32>
      %16 = vector.shape_cast %15 : vector<256x128xf32> to vector<2x128x128xf32>
      %c0_17 = arith.constant 0 : index
      %c0_18 = arith.constant 0 : index
      %c0_19 = arith.constant 0 : index
      %17 = vector.load %arg6[%c0_17, %c0_18, %c0_19] : memref<2x128x128xf32, #tpu.memory_space<vmem>>, vector<2x128x128xf32>
      tpu.vector_store %arg6[%c0_17, %c0_18, %c0_19], %16 {strides = array<i32>} : memref<2x128x128xf32, #tpu.memory_space<vmem>>, vector<2x128x128xf32>,
    } else {
    }
    %c0 = arith.constant 0 : index
    %c0_1 = arith.constant 0 : index
    %c0_2 = arith.constant 0 : index
    %3 = vector.load %arg3[%c0, %c0_1, %c0_2] : memref<2x128x128xf32, #tpu.memory_space<vmem>>, vector<2x128x128xf32>
    %c0_3 = arith.constant 0 : index
    %c0_4 = arith.constant 0 : index
    %c0_5 = arith.constant 0 : index
    %4 = vector.load %arg6[%c0_3, %c0_4, %c0_5] : memref<2x128x128xf32, #tpu.memory_space<vmem>>, vector<2x128x128xf32>
    "tpu.trace_start"() <{level = 10 : i32, message = "bij,bjf->bif"}> : () -> ()
    %cst = arith.constant dense<0.000000e+00> : vector<2x128x128xf32>
    %5 = tpu.matmul %3, %4, %cst {dimension_numbers = #tpu.dot_dimension_numbers<[2], [1], [1], [2], [0, 0, 0, 1, 1, 2], [0], [0]>} : vector<2x128x128xf32>, vector<2x128x128xf32>, vector<2x128x128xf32> -> vector<2x128x128xf32>
    %cst_6 = arith.constant 0.000000e+00 : f32
    "tpu.trace_stop"() : () -> ()
    %6 = vector.broadcast %cst_6 : f32 to vector<2x128x128xf32>
    %7 = arith.cmpf oge, %5, %6 : vector<2x128x128xf32>
    %cst_7 = arith.constant 2.000000e-01 : f32
    %8 = vector.broadcast %cst_7 : f32 to vector<2x128x128xf32>
    %9 = arith.mulf %8, %5 : vector<2x128x128xf32>
    %10 = arith.select %7, %5, %9 : vector<2x128x128xi1>, vector<2x128x128xf32>
    %c0_8 = arith.constant 0 : index
    %c0_9 = arith.constant 0 : index
    %c0_10 = arith.constant 0 : index
    %11 = vector.load %arg5[%c0_8, %c0_9, %c0_10] : memref<2x128x128xf32, #tpu.memory_space<vmem>>, vector<2x128x128xf32>
    tpu.vector_store %arg5[%c0_8, %c0_9, %c0_10], %10 {strides = array<i32>} : memref<2x128x128xf32, #tpu.memory_space<vmem>>, vector<2x128x128xf32>,
    return
  }
  func.func @transform_0(%arg0: i32, %arg1: i32) -> (i32, i32, i32) {
    %c0_i32 = arith.constant 0 : i32
    %c0_i32_0 = arith.constant 0 : i32
    %c0_i32_1 = arith.constant 0 : i32
    return %arg0, %c0_i32, %c0_i32_0 : i32, i32, i32
  }
  func.func @transform_1(%arg0: i32, %arg1: i32) -> (i32, i32, i32) {
    %c0_i32 = arith.constant 0 : i32
    %c0_i32_0 = arith.constant 0 : i32
    return %arg0, %arg1, %c0_i32 : i32, i32, i32
  }
  func.func @transform_2(%arg0: i32, %arg1: i32) -> (i32, i32) {
    %c0_i32 = arith.constant 0 : i32
    %c0_i32_0 = arith.constant 0 : i32
    %c0_i32_1 = arith.constant 0 : i32
    return %c0_i32, %c0_i32_0 : i32, i32
  }
  func.func @transform_3(%arg0: i32, %arg1: i32) -> (i32, i32, i32) {
    %c0_i32 = arith.constant 0 : i32
    %c0_i32_0 = arith.constant 0 : i32
    return %arg0, %arg1, %c0_i32 : i32, i32, i32
  }
}

</mosaic_0001>

<llo_original>
// kernel: tpu_custom_call.1
$region0: #{tpu_custom_call.1}
  #allocation0 [shape = 'u32[]', space=smem, size = 0x4, offset = 0x4, fixed_abs, tag = 'smem constant byte address 0x4 - core index']
  #allocation1 [shape = 'u32[144,128]{1,0:T(1,128)}', space=vmem, size = 0x12000, scoped, tag = 'internal scratch']
  #allocation2 [shape = 'f32[2,128,128]{2,1,0:T(8,128)}', space=vmem, size = 0x20000, scoped, tag = 'scratch operand']
  %s0 = inlined_call_operand.hbm [shape: f32[2,128,128], index: 0, kind: input, shape index: {}]
  %s1 = inlined_call_operand.hbm [shape: f32[2,128,128], index: 1, kind: input, shape index: {}]
  %s2 = inlined_call_operand.hbm [shape: f32[128,128], index: 2, kind: input, shape index: {}]
  %s3 = inlined_call_operand.hbm [shape: f32[2,128,128], index: 3, kind: output, shape index: {}]
  %s4 = sld [smem:[#allocation0]]
  $region38: #{tpu_custom_call.1} parent=0
    _
  %s6 = ssub.s32 1, %s4
  %s7 = scalar_select 0, %s6, %s4
  $region1: #{tpu_custom_call.1} parent=0
    #allocation3 [shape = 'u8[131072]{0}', space=vmem, size = 0x20000, scoped, tag = 'input window, operand 0, single buffered']
    #allocation4 [shape = 's32[1]{0}', space=sflag, size = 0x4, scoped, tag = 'scoped memory for tpu_custom_call.1']
    #allocation5 [shape = 's32[1]{0}', space=sflag, size = 0x4, scoped, tag = 'scoped memory for tpu_custom_call.1']
    #allocation6 [shape = 'u8[131072]{0}', space=vmem, size = 0x20000, scoped, tag = 'input window, operand 1, single buffered']
    #allocation7 [shape = 's32[1]{0}', space=sflag, size = 0x4, scoped, tag = 'scoped memory for tpu_custom_call.1']
    #allocation8 [shape = 'u8[65536]{0}', space=vmem, size = 0x10000, scoped, tag = 'input window, operand 2, single buffered']
    #allocation9 [shape = 'u8[131072]{0}', space=vmem, size = 0x20000, scoped, tag = 'output window, operand 0, single buffered']
    %8 = vsyncpa [#allocation4], 0
    %9 = vsyncpa [#allocation7], 0
    %10 = vsyncpa [#allocation5], 0
    // Predicated region
    $region2: #{tpu_custom_call.1} parent=1 // pred_check
      _
    $region3: #{tpu_custom_call.1} parent=1 // pred_check_branch
      %12 = sbr.rel (0) target = $region5
    $region4: #{tpu_custom_call.1} parent=1 // pred_region
      %s14 = ssub.s32 4096, 4096
      %15 = vsyncadd [#allocation4], %s14
      %s16 = sshll.u32 [#allocation3], 4
      %s17 = int_to_ptr.vmem [resolvable:$true] %s16
      %22 = dma.hbm_to_vmem [thread:$0]  %s0, 4096, %s17, [#allocation4], 128, 128, 8
    $region5: #{tpu_custom_call.1} parent=1 // pred_fallthru
      _
    // Predicated region
    $region6: #{tpu_custom_call.1} parent=1 // pred_check
      _
    $region7: #{tpu_custom_call.1} parent=1 // pred_check_branch
      %24 = sbr.rel (0) target = $region9
    $region8: #{tpu_custom_call.1} parent=1 // pred_region
      %s26 = ssub.s32 4096, 4096
      %27 = vsyncadd [#allocation7], %s26
      %s28 = sshll.u32 [#allocation6], 4
      %s29 = int_to_ptr.vmem [resolvable:$true] %s28
      %34 = dma.hbm_to_vmem [thread:$0]  %s1, 4096, %s29, [#allocation7], 128, 128, 8
    $region9: #{tpu_custom_call.1} parent=1 // pred_fallthru
      _
    // Predicated region
    $region10: #{tpu_custom_call.1} parent=1 // pred_check
      _
    $region11: #{tpu_custom_call.1} parent=1 // pred_check_branch
      %36 = sbr.rel (0) target = $region13
    $region12: #{tpu_custom_call.1} parent=1 // pred_region
      %s38 = ssub.s32 2048, 2048
      %39 = vsyncadd [#allocation7], %s38
      %s40 = sshll.u32 [#allocation8], 4
      %s41 = int_to_ptr.vmem [resolvable:$true] %s40
      %46 = dma.hbm_to_vmem [thread:$0]  %s2, 2048, %s41, [#allocation7], 128, 128, 8
    $region13: #{tpu_custom_call.1} parent=1 // pred_fallthru
      _
    // Predicated region
    $region14: #{tpu_custom_call.1} parent=1 // pred_check
      _
    $region15: #{tpu_custom_call.1} parent=1 // pred_check_branch
      %48 = sbr.rel (0) target = $region17
    $region16: #{tpu_custom_call.1} parent=1 // pred_region
      %49 = dma.done [#allocation4], 4096
    $region17: #{tpu_custom_call.1} parent=1 // pred_fallthru
      _
    // Predicated region
    $region18: #{tpu_custom_call.1} parent=1 // pred_check
      _
    $region19: #{tpu_custom_call.1} parent=1 // pred_check_branch
      %51 = sbr.rel (0) target = $region21
    $region20: #{tpu_custom_call.1} parent=1 // pred_region
      %52 = dma.done [#allocation7], 4096
    $region21: #{tpu_custom_call.1} parent=1 // pred_fallthru
      _
    // Predicated region
    $region22: #{tpu_custom_call.1} parent=1 // pred_check
      _
    $region23: #{tpu_custom_call.1} parent=1 // pred_check_branch
      %54 = sbr.rel (0) target = $region25
    $region24: #{tpu_custom_call.1} parent=1 // pred_region
      %55 = dma.done [#allocation7], 2048
    $region25: #{tpu_custom_call.1} parent=1 // pred_fallthru
      _
    %p56 = scmp.eq.s32.totalorder 0, 0
    // Predicated region
    $region26: #{tpu_custom_call.1} parent=1 // pred_check
      %p57 = pneg %p56
    $region27: #{tpu_custom_call.1} parent=1 // pred_check_branch
      %59 = sbr.rel (%p57) target = $region29
    $region28: #{tpu_custom_call.1} parent=1 // pred_region
      %v60 = vld [vmem:[#allocation3] sm:$0xff]
      %v61 = vld [vmem:[#allocation3 + $0x8] sm:$0xff]
      %v62 = vld [vmem:[#allocation3 + $0x10] sm:$0xff]
      %v63 = vld [vmem:[#allocation3 + $0x18] sm:$0xff]
      %v64 = vld [vmem:[#allocation3 + $0x20] sm:$0xff]
      %v65 = vld [vmem:[#allocation3 + $0x28] sm:$0xff]
      %v66 = vld [vmem:[#allocation3 + $0x30] sm:$0xff]
      %v67 = vld [vmem:[#allocation3 + $0x38] sm:$0xff]
      %v68 = vld [vmem:[#allocation3 + $0x40] sm:$0xff]
      %v69 = vld [vmem:[#allocation3 + $0x48] sm:$0xff]
      %v70 = vld [vmem:[#allocation3 + $0x50] sm:$0xff]
      %v71 = vld [vmem:[#allocation3 + $0x58] sm:$0xff]
      %v72 = vld [vmem:[#allocation3 + $0x60] sm:$0xff]
      %v73 = vld [vmem:[#allocation3 + $0x68] sm:$0xff]
      %v74 = vld [vmem:[#allocation3 + $0x70] sm:$0xff]
      %v75 = vld [vmem:[#allocation3 + $0x78] sm:$0xff]
      %v76 = vld [vmem:[#allocation3 + $0x80] sm:$0xff]
      %v77 = vld [vmem:[#allocation3 + $0x88] sm:$0xff]
      %v78 = vld [vmem:[#allocation3 + $0x90] sm:$0xff]
      %v79 = vld [vmem:[#allocation3 + $0x98] sm:$0xff]
      %v80 = vld [vmem:[#allocation3 + $0xa0] sm:$0xff]
      %v81 = vld [vmem:[#allocation3 + $0xa8] sm:$0xff]
      %v82 = vld [vmem:[#allocation3 + $0xb0] sm:$0xff]
      %v83 = vld [vmem:[#allocation3 + $0xb8] sm:$0xff]
      %v84 = vld [vmem:[#allocation3 + $0xc0] sm:$0xff]
      %v85 = vld [vmem:[#allocation3 + $0xc8] sm:$0xff]
      %v86 = vld [vmem:[#allocation3 + $0xd0] sm:$0xff]
      %v87 = vld [vmem:[#allocation3 + $0xd8] sm:$0xff]
      %v88 = vld [vmem:[#allocation3 + $0xe0] sm:$0xff]
      %v89 = vld [vmem:[#allocation3 + $0xe8] sm:$0xff]
      %v90 = vld [vmem:[#allocation3 + $0xf0] sm:$0xff]
      %v91 = vld [vmem:[#allocation3 + $0xf8] sm:$0xff]
      %v92 = vld [vmem:[#allocation8] sm:$0xff]
      %v93 = vld [vmem:[#allocation8 + $0x8] sm:$0xff]
      %v94 = vld [vmem:[#allocation8 + $0x10] sm:$0xff]
      %v95 = vld [vmem:[#allocation8 + $0x18] sm:$0xff]
      %v96 = vld [vmem:[#allocation8 + $0x20] sm:$0xff]
      %v97 = vld [vmem:[#allocation8 + $0x28] sm:$0xff]
      %v98 = vld [vmem:[#allocation8 + $0x30] sm:$0xff]
      %v99 = vld [vmem:[#allocation8 + $0x38] sm:$0xff]
      %v100 = vld [vmem:[#allocation8 + $0x40] sm:$0xff]
      %v101 = vld [vmem:[#allocation8 + $0x48] sm:$0xff]
      %v102 = vld [vmem:[#allocation8 + $0x50] sm:$0xff]
      %v103 = vld [vmem:[#allocation8 + $0x58] sm:$0xff]
      %v104 = vld [vmem:[#allocation8 + $0x60] sm:$0xff]
      %v105 = vld [vmem:[#allocation8 + $0x68] sm:$0xff]
      %v106 = vld [vmem:[#allocation8 + $0x70] sm:$0xff]
      %v107 = vld [vmem:[#allocation8 + $0x78] sm:$0xff]
      %108 = vmatprep.subr.mxu0 0.0
      %109 = vmatpush1.msra.mxu0 %v107
      %110 = vmatprep.subr.mxu0 0.0
      %111 = vmatpush1.msra.mxu0 %v106
      %112 = vmatprep.subr.mxu0 0.0
      %113 = vmatpush1.msra.mxu0 %v105
      %114 = vmatprep.subr.mxu0 0.0
      %115 = vmatpush1.msra.mxu0 %v104
      %116 = vmatprep.subr.mxu0 0.0
      %117 = vmatpush1.msra.mxu0 %v103
      %118 = vmatprep.subr.mxu0 0.0
      %119 = vmatpush1.msra.mxu0 %v102
      %120 = vmatprep.subr.mxu0 0.0
      %121 = vmatpush1.msra.mxu0 %v101
      %122 = vmatprep.subr.mxu0 0.0
      %123 = vmatpush1.msra.mxu0 %v100
      %124 = vmatprep.subr.mxu0 0.0
      %125 = vmatpush1.msra.mxu0 %v99
      %126 = vmatprep.subr.mxu0 0.0
      %127 = vmatpush1.msra.mxu0 %v98
      %128 = vmatprep.subr.mxu0 0.0
      %129 = vmatpush1.msra.mxu0 %v97
      %130 = vmatprep.subr.mxu0 0.0
      %131 = vmatpush1.msra.mxu0 %v96
      %132 = vmatprep.subr.mxu0 0.0
      %133 = vmatpush1.msra.mxu0 %v95
      %134 = vmatprep.subr.mxu0 0.0
      %135 = vmatpush1.msra.mxu0 %v94
      %136 = vmatprep.subr.mxu0 0.0
      %137 = vmatpush1.msra.mxu0 %v93
      %138 = vmatprep.subr.mxu0 0.0
      %139 = vmatpush1.msra.mxu0 %v92
      %140 = vmatprep.subr.mxu0 0.0
      %141 = vmatpush2.msra.mxu0 0.0
      %142 = vmatprep.subr.mxu0 0.0
      %143 = vmatpush2.msra.mxu0 0.0
      %144 = vmatprep.subr.mxu0 0.0
      %145 = vmatpush2.msra.mxu0 0.0
      %146 = vmatprep.subr.mxu0 0.0
      %147 = vmatpush2.msra.mxu0 0.0
      %148 = vmatprep.subr.mxu0 0.0
      %149 = vmatpush2.msra.mxu0 0.0
      %150 = vmatprep.subr.mxu0 0.0
      %151 = vmatpush2.msra.mxu0 0.0
      %152 = vmatprep.subr.mxu0 0.0
      %153 = vmatpush2.msra.mxu0 0.0
      %154 = vmatprep.subr.mxu0 0.0
      %155 = vmatpush2.msra.mxu0 0.0
      %156 = vmatprep.subr.mxu0 0.0
      %157 = vmatpush2.msra.mxu0 0.0
      %158 = vmatprep.subr.mxu0 0.0
      %159 = vmatpush2.msra.mxu0 0.0
      %160 = vmatprep.subr.mxu0 0.0
      %161 = vmatpush2.msra.mxu0 0.0
      %162 = vmatprep.subr.mxu0 0.0
      %163 = vmatpush2.msra.mxu0 0.0
      %164 = vmatprep.subr.mxu0 0.0
      %165 = vmatpush2.msra.mxu0 0.0
      %166 = vmatprep.subr.mxu0 0.0
      %167 = vmatpush2.msra.mxu0 0.0
      %168 = vmatprep.subr.mxu0 0.0
      %169 = vmatpush2.msra.mxu0 0.0
      %170 = vmatprep.subr.mxu0 0.0
      %171 = vmatpush2.msra.mxu0 0.0
      %172 = vmatprep.mubr.f32.mxu0 0.0
      %173 = vmatmul.mubr.f32.gmra.mxu0 %v60
      %v174 = vpop.f32.mrf.mxu0
      %v175 = vadd.f32 0.0, %v174
      %v176 = vpop.f32.mrf.mxu0
      %177 = vmatprep.mubr.f32.mxu0 0.0
      %178 = vmatmul.mubr.f32.gmra.mxu0 %v61
      %v179 = vpop.f32.mrf.mxu0
      %v180 = vadd.f32 0.0, %v179
      %v181 = vpop.f32.mrf.mxu0
      %182 = vmatprep.mubr.f32.mxu0 0.0
      %183 = vmatmul.mubr.f32.gmra.mxu0 %v62
      %v184 = vpop.f32.mrf.mxu0
      %v185 = vadd.f32 0.0, %v184
      %v186 = vpop.f32.mrf.mxu0
      %187 = vmatprep.mubr.f32.mxu0 0.0
      %188 = vmatmul.mubr.f32.gmra.mxu0 %v63
      %v189 = vpop.f32.mrf.mxu0
      %v190 = vadd.f32 0.0, %v189
      %v191 = vpop.f32.mrf.mxu0
      %192 = vmatprep.mubr.f32.mxu0 0.0
      %193 = vmatmul.mubr.f32.gmra.mxu0 %v64
      %v194 = vpop.f32.mrf.mxu0
      %v195 = vadd.f32 0.0, %v194
      %v196 = vpop.f32.mrf.mxu0
      %197 = vmatprep.mubr.f32.mxu0 0.0
      %198 = vmatmul.mubr.f32.gmra.mxu0 %v65
      %v199 = vpop.f32.mrf.mxu0
      %v200 = vadd.f32 0.0, %v199
      %v201 = vpop.f32.mrf.mxu0
      %202 = vmatprep.mubr.f32.mxu0 0.0
      %203 = vmatmul.mubr.f32.gmra.mxu0 %v66
      %v204 = vpop.f32.mrf.mxu0
      %v205 = vadd.f32 0.0, %v204
      %v206 = vpop.f32.mrf.mxu0
      %207 = vmatprep.mubr.f32.mxu0 0.0
      %208 = vmatmul.mubr.f32.gmra.mxu0 %v67
      %v209 = vpop.f32.mrf.mxu0
      %v210 = vadd.f32 0.0, %v209
      %v211 = vpop.f32.mrf.mxu0
      %212 = vmatprep.mubr.f32.mxu0 0.0
      %213 = vmatmul.mubr.f32.gmra.mxu0 %v68
      %v214 = vpop.f32.mrf.mxu0
      %v215 = vadd.f32 0.0, %v214
      %v216 = vpop.f32.mrf.mxu0
      %217 = vmatprep.mubr.f32.mxu0 0.0
      %218 = vmatmul.mubr.f32.gmra.mxu0 %v69
      %v219 = vpop.f32.mrf.mxu0
      %v220 = vadd.f32 0.0, %v219
      %v221 = vpop.f32.mrf.mxu0
      %222 = vmatprep.mubr.f32.mxu0 0.0
      %223 = vmatmul.mubr.f32.gmra.mxu0 %v70
      %v224 = vpop.f32.mrf.mxu0
      %v225 = vadd.f32 0.0, %v224
      %v226 = vpop.f32.mrf.mxu0
      %227 = vmatprep.mubr.f32.mxu0 0.0
      %228 = vmatmul.mubr.f32.gmra.mxu0 %v71
      %v229 = vpop.f32.mrf.mxu0
      %v230 = vadd.f32 0.0, %v229
      %v231 = vpop.f32.mrf.mxu0
      %232 = vmatprep.mubr.f32.mxu0 0.0
      %233 = vmatmul.mubr.f32.gmra.mxu0 %v72
      %v234 = vpop.f32.mrf.mxu0
      %v235 = vadd.f32 0.0, %v234
      %v236 = vpop.f32.mrf.mxu0
      %237 = vmatprep.mubr.f32.mxu0 0.0
      %238 = vmatmul.mubr.f32.gmra.mxu0 %v73
      %v239 = vpop.f32.mrf.mxu0
      %v240 = vadd.f32 0.0, %v239
      %v241 = vpop.f32.mrf.mxu0
      %242 = vmatprep.mubr.f32.mxu0 0.0
      %243 = vmatmul.mubr.f32.gmra.mxu0 %v74
      %v244 = vpop.f32.mrf.mxu0
      %v245 = vadd.f32 0.0, %v244
      %v246 = vpop.f32.mrf.mxu0
      %247 = vmatprep.mubr.f32.mxu0 0.0
      %248 = vmatmul.mubr.f32.gmra.mxu0 %v75
      %v249 = vpop.f32.mrf.mxu0
      %v250 = vadd.f32 0.0, %v249
      %v251 = vpop.f32.mrf.mxu0
      %252 = vmatprep.mubr.f32.mxu0 0.0
      %253 = vmatmul.mubr.f32.gmra.mxu0 %v76
      %v254 = vpop.f32.mrf.mxu0
      %v255 = vadd.f32 0.0, %v254
      %v256 = vpop.f32.mrf.mxu0
      %257 = vmatprep.mubr.f32.mxu0 0.0
      %258 = vmatmul.mubr.f32.gmra.mxu0 %v77
      %v259 = vpop.f32.mrf.mxu0
      %v260 = vadd.f32 0.0, %v259
      %v261 = vpop.f32.mrf.mxu0
      %262 = vmatprep.mubr.f32.mxu0 0.0
      %263 = vmatmul.mubr.f32.gmra.mxu0 %v78
      %v264 = vpop.f32.mrf.mxu0
      %v265 = vadd.f32 0.0, %v264
      %v266 = vpop.f32.mrf.mxu0
      %267 = vmatprep.mubr.f32.mxu0 0.0
      %268 = vmatmul.mubr.f32.gmra.mxu0 %v79
      %v269 = vpop.f32.mrf.mxu0
      %v270 = vadd.f32 0.0, %v269
      %v271 = vpop.f32.mrf.mxu0
      %272 = vmatprep.mubr.f32.mxu0 0.0
      %273 = vmatmul.mubr.f32.gmra.mxu0 %v80
      %v274 = vpop.f32.mrf.mxu0
      %v275 = vadd.f32 0.0, %v274
      %v276 = vpop.f32.mrf.mxu0
      %277 = vmatprep.mubr.f32.mxu0 0.0
      %278 = vmatmul.mubr.f32.gmra.mxu0 %v81
      %v279 = vpop.f32.mrf.mxu0
      %v280 = vadd.f32 0.0, %v279
      %v281 = vpop.f32.mrf.mxu0
      %282 = vmatprep.mubr.f32.mxu0 0.0
      %283 = vmatmul.mubr.f32.gmra.mxu0 %v82
      %v284 = vpop.f32.mrf.mxu0
      %v285 = vadd.f32 0.0, %v284
      %v286 = vpop.f32.mrf.mxu0
      %287 = vmatprep.mubr.f32.mxu0 0.0
      %288 = vmatmul.mubr.f32.gmra.mxu0 %v83
      %v289 = vpop.f32.mrf.mxu0
      %v290 = vadd.f32 0.0, %v289
      %v291 = vpop.f32.mrf.mxu0
      %292 = vmatprep.mubr.f32.mxu0 0.0
      %293 = vmatmul.mubr.f32.gmra.mxu0 %v84
      %v294 = vpop.f32.mrf.mxu0
      %v295 = vadd.f32 0.0, %v294
      %v296 = vpop.f32.mrf.mxu0
      %297 = vmatprep.mubr.f32.mxu0 0.0
      %298 = vmatmul.mubr.f32.gmra.mxu0 %v85
      %v299 = vpop.f32.mrf.mxu0
      %v300 = vadd.f32 0.0, %v299
      %v301 = vpop.f32.mrf.mxu0
      %302 = vmatprep.mubr.f32.mxu0 0.0
      %303 = vmatmul.mubr.f32.gmra.mxu0 %v86
      %v304 = vpop.f32.mrf.mxu0
      %v305 = vadd.f32 0.0, %v304
      %v306 = vpop.f32.mrf.mxu0
      %307 = vmatprep.mubr.f32.mxu0 0.0
      %308 = vmatmul.mubr.f32.gmra.mxu0 %v87
      %v309 = vpop.f32.mrf.mxu0
      %v310 = vadd.f32 0.0, %v309
      %v311 = vpop.f32.mrf.mxu0
      %312 = vmatprep.mubr.f32.mxu0 0.0
      %313 = vmatmul.mubr.f32.gmra.mxu0 %v88
      %v314 = vpop.f32.mrf.mxu0
      %v315 = vadd.f32 0.0, %v314
      %v316 = vpop.f32.mrf.mxu0
      %317 = vmatprep.mubr.f32.mxu0 0.0
      %318 = vmatmul.mubr.f32.gmra.mxu0 %v89
      %v319 = vpop.f32.mrf.mxu0
      %v320 = vadd.f32 0.0, %v319
      %v321 = vpop.f32.mrf.mxu0
      %322 = vmatprep.mubr.f32.mxu0 0.0
      %323 = vmatmul.mubr.f32.gmra.mxu0 %v90
      %v324 = vpop.f32.mrf.mxu0
      %v325 = vadd.f32 0.0, %v324
      %v326 = vpop.f32.mrf.mxu0
      %327 = vmatprep.mubr.f32.mxu0 0.0
      %328 = vmatmul.mubr.f32.gmra.mxu0 %v91
      %v329 = vpop.f32.mrf.mxu0
      %v330 = vadd.f32 0.0, %v329
      %v331 = vpop.f32.mrf.mxu0
      %332 = vdwg.mxu0
      %333 = vst [vmem:[#allocation2] sm:$0xff] %v175
      %334 = vst [vmem:[#allocation2 + $0x8] sm:$0xff] %v180
      %335 = vst [vmem:[#allocation2 + $0x10] sm:$0xff] %v185
      %336 = vst [vmem:[#allocation2 + $0x18] sm:$0xff] %v190
      %337 = vst [vmem:[#allocation2 + $0x20] sm:$0xff] %v195
      %338 = vst [vmem:[#allocation2 + $0x28] sm:$0xff] %v200
      %339 = vst [vmem:[#allocation2 + $0x30] sm:$0xff] %v205
      %340 = vst [vmem:[#allocation2 + $0x38] sm:$0xff] %v210
      %341 = vst [vmem:[#allocation2 + $0x40] sm:$0xff] %v215
      %342 = vst [vmem:[#allocation2 + $0x48] sm:$0xff] %v220
      %343 = vst [vmem:[#allocation2 + $0x50] sm:$0xff] %v225
      %344 = vst [vmem:[#allocation2 + $0x58] sm:$0xff] %v230
      %345 = vst [vmem:[#allocation2 + $0x60] sm:$0xff] %v235
      %346 = vst [vmem:[#allocation2 + $0x68] sm:$0xff] %v240
      %347 = vst [vmem:[#allocation2 + $0x70] sm:$0xff] %v245
      %348 = vst [vmem:[#allocation2 + $0x78] sm:$0xff] %v250
      %349 = vst [vmem:[#allocation2 + $0x80] sm:$0xff] %v255
      %350 = vst [vmem:[#allocation2 + $0x88] sm:$0xff] %v260
      %351 = vst [vmem:[#allocation2 + $0x90] sm:$0xff] %v265
      %352 = vst [vmem:[#allocation2 + $0x98] sm:$0xff] %v270
      %353 = vst [vmem:[#allocation2 + $0xa0] sm:$0xff] %v275
      %354 = vst [vmem:[#allocation2 + $0xa8] sm:$0xff] %v280
      %355 = vst [vmem:[#allocation2 + $0xb0] sm:$0xff] %v285
      %356 = vst [vmem:[#allocation2 + $0xb8] sm:$0xff] %v290
      %357 = vst [vmem:[#allocation2 + $0xc0] sm:$0xff] %v295
      %358 = vst [vmem:[#allocation2 + $0xc8] sm:$0xff] %v300
      %359 = vst [vmem:[#allocation2 + $0xd0] sm:$0xff] %v305
      %360 = vst [vmem:[#allocation2 + $0xd8] sm:$0xff] %v310
      %361 = vst [vmem:[#allocation2 + $0xe0] sm:$0xff] %v315
      %362 = vst [vmem:[#allocation2 + $0xe8] sm:$0xff] %v320
      %363 = vst [vmem:[#allocation2 + $0xf0] sm:$0xff] %v325
      %364 = vst [vmem:[#allocation2 + $0xf8] sm:$0xff] %v330
    $region29: #{tpu_custom_call.1} parent=1 // pred_fallthru
      _
    %v365 = vld [vmem:[#allocation6] sm:$0xff]
    %v366 = vld [vmem:[#allocation6 + $0x8] sm:$0xff]
    %v367 = vld [vmem:[#allocation6 + $0x10] sm:$0xff]
    %v368 = vld [vmem:[#allocation6 + $0x18] sm:$0xff]
    %v369 = vld [vmem:[#allocation6 + $0x20] sm:$0xff]
    %v370 = vld [vmem:[#allocation6 + $0x28] sm:$0xff]
    %v371 = vld [vmem:[#allocation6 + $0x30] sm:$0xff]
    %v372 = vld [vmem:[#allocation6 + $0x38] sm:$0xff]
    %v373 = vld [vmem:[#allocation6 + $0x40] sm:$0xff]
    %v374 = vld [vmem:[#allocation6 + $0x48] sm:$0xff]
    %v375 = vld [vmem:[#allocation6 + $0x50] sm:$0xff]
    %v376 = vld [vmem:[#allocation6 + $0x58] sm:$0xff]
    %v377 = vld [vmem:[#allocation6 + $0x60] sm:$0xff]
    %v378 = vld [vmem:[#allocation6 + $0x68] sm:$0xff]
    %v379 = vld [vmem:[#allocation6 + $0x70] sm:$0xff]
    %v380 = vld [vmem:[#allocation6 + $0x78] sm:$0xff]
    %v381 = vld [vmem:[#allocation6 + $0x80] sm:$0xff]
    %v382 = vld [vmem:[#allocation6 + $0x88] sm:$0xff]
    %v383 = vld [vmem:[#allocation6 + $0x90] sm:$0xff]
    %v384 = vld [vmem:[#allocation6 + $0x98] sm:$0xff]
    %v385 = vld [vmem:[#allocation6 + $0xa0] sm:$0xff]
    %v386 = vld [vmem:[#allocation6 + $0xa8] sm:$0xff]
    %v387 = vld [vmem:[#allocation6 + $0xb0] sm:$0xff]
    %v388 = vld [vmem:[#allocation6 + $0xb8] sm:$0xff]
    %v389 = vld [vmem:[#allocation6 + $0xc0] sm:$0xff]
    %v390 = vld [vmem:[#allocation6 + $0xc8] sm:$0xff]
    %v391 = vld [vmem:[#allocation6 + $0xd0] sm:$0xff]
    %v392 = vld [vmem:[#allocation6 + $0xd8] sm:$0xff]
    %v393 = vld [vmem:[#allocation6 + $0xe0] sm:$0xff]
    %v394 = vld [vmem:[#allocation6 + $0xe8] sm:$0xff]
    %v395 = vld [vmem:[#allocation6 + $0xf0] sm:$0xff]
    %v396 = vld [vmem:[#allocation6 + $0xf8] sm:$0xff]
    %v397 = vld [vmem:[#allocation2] sm:$0xff]
    %v398 = vld [vmem:[#allocation2 + $0x8] sm:$0xff]
    %v399 = vld [vmem:[#allocation2 + $0x10] sm:$0xff]
    %v400 = vld [vmem:[#allocation2 + $0x18] sm:$0xff]
    %v401 = vld [vmem:[#allocation2 + $0x20] sm:$0xff]
    %v402 = vld [vmem:[#allocation2 + $0x28] sm:$0xff]
    %v403 = vld [vmem:[#allocation2 + $0x30] sm:$0xff]
    %v404 = vld [vmem:[#allocation2 + $0x38] sm:$0xff]
    %v405 = vld [vmem:[#allocation2 + $0x40] sm:$0xff]
    %v406 = vld [vmem:[#allocation2 + $0x48] sm:$0xff]
    %v407 = vld [vmem:[#allocation2 + $0x50] sm:$0xff]
    %v408 = vld [vmem:[#allocation2 + $0x58] sm:$0xff]
    %v409 = vld [vmem:[#allocation2 + $0x60] sm:$0xff]
    %v410 = vld [vmem:[#allocation2 + $0x68] sm:$0xff]
    %v411 = vld [vmem:[#allocation2 + $0x70] sm:$0xff]
    %v412 = vld [vmem:[#allocation2 + $0x78] sm:$0xff]
    %v413 = vld [vmem:[#allocation2 + $0x80] sm:$0xff]
    %v414 = vld [vmem:[#allocation2 + $0x88] sm:$0xff]
    %v415 = vld [vmem:[#allocation2 + $0x90] sm:$0xff]
    %v416 = vld [vmem:[#allocation2 + $0x98] sm:$0xff]
    %v417 = vld [vmem:[#allocation2 + $0xa0] sm:$0xff]
    %v418 = vld [vmem:[#allocation2 + $0xa8] sm:$0xff]
    %v419 = vld [vmem:[#allocation2 + $0xb0] sm:$0xff]
    %v420 = vld [vmem:[#allocation2 + $0xb8] sm:$0xff]
    %v421 = vld [vmem:[#allocation2 + $0xc0] sm:$0xff]
    %v422 = vld [vmem:[#allocation2 + $0xc8] sm:$0xff]
    %v423 = vld [vmem:[#allocation2 + $0xd0] sm:$0xff]
    %v424 = vld [vmem:[#allocation2 + $0xd8] sm:$0xff]
    %v425 = vld [vmem:[#allocation2 + $0xe0] sm:$0xff]
    %v426 = vld [vmem:[#allocation2 + $0xe8] sm:$0xff]
    %v427 = vld [vmem:[#allocation2 + $0xf0] sm:$0xff]
    %v428 = vld [vmem:[#allocation2 + $0xf8] sm:$0xff]
    %429 = vmatprep.subr.mxu0 0.0
    %430 = vmatpush1.msra.mxu0 %v412
    %431 = vmatprep.subr.mxu0 0.0
    %432 = vmatpush1.msra.mxu0 %v411
    %433 = vmatprep.subr.mxu0 0.0
    %434 = vmatpush1.msra.mxu0 %v410
    %435 = vmatprep.subr.mxu0 0.0
    %436 = vmatpush1.msra.mxu0 %v409
    %437 = vmatprep.subr.mxu0 0.0
    %438 = vmatpush1.msra.mxu0 %v408
    %439 = vmatprep.subr.mxu0 0.0
    %440 = vmatpush1.msra.mxu0 %v407
    %441 = vmatprep.subr.mxu0 0.0
    %442 = vmatpush1.msra.mxu0 %v406
    %443 = vmatprep.subr.mxu0 0.0
    %444 = vmatpush1.msra.mxu0 %v405
    %445 = vmatprep.subr.mxu0 0.0
    %446 = vmatpush1.msra.mxu0 %v404
    %447 = vmatprep.subr.mxu0 0.0
    %448 = vmatpush1.msra.mxu0 %v403
    %449 = vmatprep.subr.mxu0 0.0
    %450 = vmatpush1.msra.mxu0 %v402
    %451 = vmatprep.subr.mxu0 0.0
    %452 = vmatpush1.msra.mxu0 %v401
    %453 = vmatprep.subr.mxu0 0.0
    %454 = vmatpush1.msra.mxu0 %v400
    %455 = vmatprep.subr.mxu0 0.0
    %456 = vmatpush1.msra.mxu0 %v399
    %457 = vmatprep.subr.mxu0 0.0
    %458 = vmatpush1.msra.mxu0 %v398
    %459 = vmatprep.subr.mxu0 0.0
    %460 = vmatpush1.msra.mxu0 %v397
    %461 = vmatprep.subr.mxu0 0.0
    %462 = vmatpush2.msra.mxu0 0.0
    %463 = vmatprep.subr.mxu0 0.0
    %464 = vmatpush2.msra.mxu0 0.0
    %465 = vmatprep.subr.mxu0 0.0
    %466 = vmatpush2.msra.mxu0 0.0
    %467 = vmatprep.subr.mxu0 0.0
    %468 = vmatpush2.msra.mxu0 0.0
    %469 = vmatprep.subr.mxu0 0.0
    %470 = vmatpush2.msra.mxu0 0.0
    %471 = vmatprep.subr.mxu0 0.0
    %472 = vmatpush2.msra.mxu0 0.0
    %473 = vmatprep.subr.mxu0 0.0
    %474 = vmatpush2.msra.mxu0 0.0
    %475 = vmatprep.subr.mxu0 0.0
    %476 = vmatpush2.msra.mxu0 0.0
    %477 = vmatprep.subr.mxu0 0.0
    %478 = vmatpush2.msra.mxu0 0.0
    %479 = vmatprep.subr.mxu0 0.0
    %480 = vmatpush2.msra.mxu0 0.0
    %481 = vmatprep.subr.mxu0 0.0
    %482 = vmatpush2.msra.mxu0 0.0
    %483 = vmatprep.subr.mxu0 0.0
    %484 = vmatpush2.msra.mxu0 0.0
    %485 = vmatprep.subr.mxu0 0.0
    %486 = vmatpush2.msra.mxu0 0.0
    %487 = vmatprep.subr.mxu0 0.0
    %488 = vmatpush2.msra.mxu0 0.0
    %489 = vmatprep.subr.mxu0 0.0
    %490 = vmatpush2.msra.mxu0 0.0
    %491 = vmatprep.subr.mxu0 0.0
    %492 = vmatpush2.msra.mxu0 0.0
    %493 = vmatprep.mubr.f32.mxu0 0.0
    %494 = vmatmul.mubr.f32.gmra.mxu0 %v365
    %v495 = vpop.f32.mrf.mxu0
    %v496 = vadd.f32 0.0, %v495
    %v497 = vpop.f32.mrf.mxu0
    %498 = vmatprep.mubr.f32.mxu0 0.0
    %499 = vmatmul.mubr.f32.gmra.mxu0 %v366
    %v500 = vpop.f32.mrf.mxu0
    %v501 = vadd.f32 0.0, %v500
    %v502 = vpop.f32.mrf.mxu0
    %503 = vmatprep.mubr.f32.mxu0 0.0
    %504 = vmatmul.mubr.f32.gmra.mxu0 %v367
    %v505 = vpop.f32.mrf.mxu0
    %v506 = vadd.f32 0.0, %v505
    %v507 = vpop.f32.mrf.mxu0
    %508 = vmatprep.mubr.f32.mxu0 0.0
    %509 = vmatmul.mubr.f32.gmra.mxu0 %v368
    %v510 = vpop.f32.mrf.mxu0
    %v511 = vadd.f32 0.0, %v510
    %v512 = vpop.f32.mrf.mxu0
    %513 = vmatprep.mubr.f32.mxu0 0.0
    %514 = vmatmul.mubr.f32.gmra.mxu0 %v369
    %v515 = vpop.f32.mrf.mxu0
    %v516 = vadd.f32 0.0, %v515
    %v517 = vpop.f32.mrf.mxu0
    %518 = vmatprep.mubr.f32.mxu0 0.0
    %519 = vmatmul.mubr.f32.gmra.mxu0 %v370
    %v520 = vpop.f32.mrf.mxu0
    %v521 = vadd.f32 0.0, %v520
    %v522 = vpop.f32.mrf.mxu0
    %523 = vmatprep.mubr.f32.mxu0 0.0
    %524 = vmatmul.mubr.f32.gmra.mxu0 %v371
    %v525 = vpop.f32.mrf.mxu0
    %v526 = vadd.f32 0.0, %v525
    %v527 = vpop.f32.mrf.mxu0
    %528 = vmatprep.mubr.f32.mxu0 0.0
    %529 = vmatmul.mubr.f32.gmra.mxu0 %v372
    %v530 = vpop.f32.mrf.mxu0
    %v531 = vadd.f32 0.0, %v530
    %v532 = vpop.f32.mrf.mxu0
    %533 = vmatprep.mubr.f32.mxu0 0.0
    %534 = vmatmul.mubr.f32.gmra.mxu0 %v373
    %v535 = vpop.f32.mrf.mxu0
    %v536 = vadd.f32 0.0, %v535
    %v537 = vpop.f32.mrf.mxu0
    %538 = vmatprep.mubr.f32.mxu0 0.0
    %539 = vmatmul.mubr.f32.gmra.mxu0 %v374
    %v540 = vpop.f32.mrf.mxu0
    %v541 = vadd.f32 0.0, %v540
    %v542 = vpop.f32.mrf.mxu0
    %543 = vmatprep.mubr.f32.mxu0 0.0
    %544 = vmatmul.mubr.f32.gmra.mxu0 %v375
    %v545 = vpop.f32.mrf.mxu0
    %v546 = vadd.f32 0.0, %v545
    %v547 = vpop.f32.mrf.mxu0
    %548 = vmatprep.mubr.f32.mxu0 0.0
    %549 = vmatmul.mubr.f32.gmra.mxu0 %v376
    %v550 = vpop.f32.mrf.mxu0
    %v551 = vadd.f32 0.0, %v550
    %v552 = vpop.f32.mrf.mxu0
    %553 = vmatprep.mubr.f32.mxu0 0.0
    %554 = vmatmul.mubr.f32.gmra.mxu0 %v377
    %v555 = vpop.f32.mrf.mxu0
    %v556 = vadd.f32 0.0, %v555
    %v557 = vpop.f32.mrf.mxu0
    %558 = vmatprep.mubr.f32.mxu0 0.0
    %559 = vmatmul.mubr.f32.gmra.mxu0 %v378
    %v560 = vpop.f32.mrf.mxu0
    %v561 = vadd.f32 0.0, %v560
    %v562 = vpop.f32.mrf.mxu0
    %563 = vmatprep.mubr.f32.mxu0 0.0
    %564 = vmatmul.mubr.f32.gmra.mxu0 %v379
    %v565 = vpop.f32.mrf.mxu0
    %v566 = vadd.f32 0.0, %v565
    %v567 = vpop.f32.mrf.mxu0
    %568 = vmatprep.mubr.f32.mxu0 0.0
    %569 = vmatmul.mubr.f32.gmra.mxu0 %v380
    %v570 = vpop.f32.mrf.mxu0
    %v571 = vadd.f32 0.0, %v570
    %v572 = vpop.f32.mrf.mxu0
    %573 = vdwg.mxu0
    %574 = vmatprep.subr.mxu0 0.0
    %575 = vmatpush1.msra.mxu0 %v428
    %576 = vmatprep.subr.mxu0 0.0
    %577 = vmatpush1.msra.mxu0 %v427
    %578 = vmatprep.subr.mxu0 0.0
    %579 = vmatpush1.msra.mxu0 %v426
    %580 = vmatprep.subr.mxu0 0.0
    %581 = vmatpush1.msra.mxu0 %v425
    %582 = vmatprep.subr.mxu0 0.0
    %583 = vmatpush1.msra.mxu0 %v424
    %584 = vmatprep.subr.mxu0 0.0
    %585 = vmatpush1.msra.mxu0 %v423
    %586 = vmatprep.subr.mxu0 0.0
    %587 = vmatpush1.msra.mxu0 %v422
    %588 = vmatprep.subr.mxu0 0.0
    %589 = vmatpush1.msra.mxu0 %v421
    %590 = vmatprep.subr.mxu0 0.0
    %591 = vmatpush1.msra.mxu0 %v420
    %592 = vmatprep.subr.mxu0 0.0
    %593 = vmatpush1.msra.mxu0 %v419
    %594 = vmatprep.subr.mxu0 0.0
    %595 = vmatpush1.msra.mxu0 %v418
    %596 = vmatprep.subr.mxu0 0.0
    %597 = vmatpush1.msra.mxu0 %v417
    %598 = vmatprep.subr.mxu0 0.0
    %599 = vmatpush1.msra.mxu0 %v416
    %600 = vmatprep.subr.mxu0 0.0
    %601 = vmatpush1.msra.mxu0 %v415
    %602 = vmatprep.subr.mxu0 0.0
    %603 = vmatpush1.msra.mxu0 %v414
    %604 = vmatprep.subr.mxu0 0.0
    %605 = vmatpush1.msra.mxu0 %v413
    %606 = vmatprep.subr.mxu0 0.0
    %607 = vmatpush2.msra.mxu0 0.0
    %608 = vmatprep.subr.mxu0 0.0
    %609 = vmatpush2.msra.mxu0 0.0
    %610 = vmatprep.subr.mxu0 0.0
    %611 = vmatpush2.msra.mxu0 0.0
    %612 = vmatprep.subr.mxu0 0.0
    %613 = vmatpush2.msra.mxu0 0.0
    %614 = vmatprep.subr.mxu0 0.0
    %615 = vmatpush2.msra.mxu0 0.0
    %616 = vmatprep.subr.mxu0 0.0
    %617 = vmatpush2.msra.mxu0 0.0
    %618 = vmatprep.subr.mxu0 0.0
    %619 = vmatpush2.msra.mxu0 0.0
    %620 = vmatprep.subr.mxu0 0.0
    %621 = vmatpush2.msra.mxu0 0.0
    %622 = vmatprep.subr.mxu0 0.0
    %623 = vmatpush2.msra.mxu0 0.0
    %624 = vmatprep.subr.mxu0 0.0
    %625 = vmatpush2.msra.mxu0 0.0
    %626 = vmatprep.subr.mxu0 0.0
    %627 = vmatpush2.msra.mxu0 0.0
    %628 = vmatprep.subr.mxu0 0.0
    %629 = vmatpush2.msra.mxu0 0.0
    %630 = vmatprep.subr.mxu0 0.0
    %631 = vmatpush2.msra.mxu0 0.0
    %632 = vmatprep.subr.mxu0 0.0
    %633 = vmatpush2.msra.mxu0 0.0
    %634 = vmatprep.subr.mxu0 0.0
    %635 = vmatpush2.msra.mxu0 0.0
    %636 = vmatprep.subr.mxu0 0.0
    %637 = vmatpush2.msra.mxu0 0.0
    %638 = vmatprep.mubr.f32.mxu0 0.0
    %639 = vmatmul.mubr.f32.gmra.mxu0 %v381
    %v640 = vpop.f32.mrf.mxu0
    %v641 = vadd.f32 0.0, %v640
    %v642 = vpop.f32.mrf.mxu0
    %643 = vmatprep.mubr.f32.mxu0 0.0
    %644 = vmatmul.mubr.f32.gmra.mxu0 %v382
    %v645 = vpop.f32.mrf.mxu0
    %v646 = vadd.f32 0.0, %v645
    %v647 = vpop.f32.mrf.mxu0
    %648 = vmatprep.mubr.f32.mxu0 0.0
    %649 = vmatmul.mubr.f32.gmra.mxu0 %v383
    %v650 = vpop.f32.mrf.mxu0
    %v651 = vadd.f32 0.0, %v650
    %v652 = vpop.f32.mrf.mxu0
    %653 = vmatprep.mubr.f32.mxu0 0.0
    %654 = vmatmul.mubr.f32.gmra.mxu0 %v384
    %v655 = vpop.f32.mrf.mxu0
    %v656 = vadd.f32 0.0, %v655
    %v657 = vpop.f32.mrf.mxu0
    %658 = vmatprep.mubr.f32.mxu0 0.0
    %659 = vmatmul.mubr.f32.gmra.mxu0 %v385
    %v660 = vpop.f32.mrf.mxu0
    %v661 = vadd.f32 0.0, %v660
    %v662 = vpop.f32.mrf.mxu0
    %663 = vmatprep.mubr.f32.mxu0 0.0
    %664 = vmatmul.mubr.f32.gmra.mxu0 %v386
    %v665 = vpop.f32.mrf.mxu0
    %v666 = vadd.f32 0.0, %v665
    %v667 = vpop.f32.mrf.mxu0
    %668 = vmatprep.mubr.f32.mxu0 0.0
    %669 = vmatmul.mubr.f32.gmra.mxu0 %v387
    %v670 = vpop.f32.mrf.mxu0
    %v671 = vadd.f32 0.0, %v670
    %v672 = vpop.f32.mrf.mxu0
    %673 = vmatprep.mubr.f32.mxu0 0.0
    %674 = vmatmul.mubr.f32.gmra.mxu0 %v388
    %v675 = vpop.f32.mrf.mxu0
    %v676 = vadd.f32 0.0, %v675
    %v677 = vpop.f32.mrf.mxu0
    %678 = vmatprep.mubr.f32.mxu0 0.0
    %679 = vmatmul.mubr.f32.gmra.mxu0 %v389
    %v680 = vpop.f32.mrf.mxu0
    %v681 = vadd.f32 0.0, %v680
    %v682 = vpop.f32.mrf.mxu0
    %683 = vmatprep.mubr.f32.mxu0 0.0
    %684 = vmatmul.mubr.f32.gmra.mxu0 %v390
    %v685 = vpop.f32.mrf.mxu0
    %v686 = vadd.f32 0.0, %v685
    %v687 = vpop.f32.mrf.mxu0
    %688 = vmatprep.mubr.f32.mxu0 0.0
    %689 = vmatmul.mubr.f32.gmra.mxu0 %v391
    %v690 = vpop.f32.mrf.mxu0
    %v691 = vadd.f32 0.0, %v690
    %v692 = vpop.f32.mrf.mxu0
    %693 = vmatprep.mubr.f32.mxu0 0.0
    %694 = vmatmul.mubr.f32.gmra.mxu0 %v392
    %v695 = vpop.f32.mrf.mxu0
    %v696 = vadd.f32 0.0, %v695
    %v697 = vpop.f32.mrf.mxu0
    %698 = vmatprep.mubr.f32.mxu0 0.0
    %699 = vmatmul.mubr.f32.gmra.mxu0 %v393
    %v700 = vpop.f32.mrf.mxu0
    %v701 = vadd.f32 0.0, %v700
    %v702 = vpop.f32.mrf.mxu0
    %703 = vmatprep.mubr.f32.mxu0 0.0
    %704 = vmatmul.mubr.f32.gmra.mxu0 %v394
    %v705 = vpop.f32.mrf.mxu0
    %v706 = vadd.f32 0.0, %v705
    %v707 = vpop.f32.mrf.mxu0
    %708 = vmatprep.mubr.f32.mxu0 0.0
    %709 = vmatmul.mubr.f32.gmra.mxu0 %v395
    %v710 = vpop.f32.mrf.mxu0
    %v711 = vadd.f32 0.0, %v710
    %v712 = vpop.f32.mrf.mxu0
    %713 = vmatprep.mubr.f32.mxu0 0.0
    %714 = vmatmul.mubr.f32.gmra.mxu0 %v396
    %v715 = vpop.f32.mrf.mxu0
    %v716 = vadd.f32 0.0, %v715
    %v717 = vpop.f32.mrf.mxu0
    %718 = vdwg.mxu0
    %vm719 = vcmp.ge.f32.partialorder %v496, 0.0
    %vm720 = vcmp.ge.f32.partialorder %v501, 0.0
    %vm721 = vcmp.ge.f32.partialorder %v506, 0.0
    %vm722 = vcmp.ge.f32.partialorder %v511, 0.0
    %vm723 = vcmp.ge.f32.partialorder %v516, 0.0
    %vm724 = vcmp.ge.f32.partialorder %v521, 0.0
    %vm725 = vcmp.ge.f32.partialorder %v526, 0.0
    %vm726 = vcmp.ge.f32.partialorder %v531, 0.0
    %vm727 = vcmp.ge.f32.partialorder %v536, 0.0
    %vm728 = vcmp.ge.f32.partialorder %v541, 0.0
    %vm729 = vcmp.ge.f32.partialorder %v546, 0.0
    %vm730 = vcmp.ge.f32.partialorder %v551, 0.0
    %vm731 = vcmp.ge.f32.partialorder %v556, 0.0
    %vm732 = vcmp.ge.f32.partialorder %v561, 0.0
    %vm733 = vcmp.ge.f32.partialorder %v566, 0.0
    %vm734 = vcmp.ge.f32.partialorder %v571, 0.0
    %vm735 = vcmp.ge.f32.partialorder %v641, 0.0
    %vm736 = vcmp.ge.f32.partialorder %v646, 0.0
    %vm737 = vcmp.ge.f32.partialorder %v651, 0.0
    %vm738 = vcmp.ge.f32.partialorder %v656, 0.0
    %vm739 = vcmp.ge.f32.partialorder %v661, 0.0
    %vm740 = vcmp.ge.f32.partialorder %v666, 0.0
    %vm741 = vcmp.ge.f32.partialorder %v671, 0.0
    %vm742 = vcmp.ge.f32.partialorder %v676, 0.0
    %vm743 = vcmp.ge.f32.partialorder %v681, 0.0
    %vm744 = vcmp.ge.f32.partialorder %v686, 0.0
    %vm745 = vcmp.ge.f32.partialorder %v691, 0.0
    %vm746 = vcmp.ge.f32.partialorder %v696, 0.0
    %vm747 = vcmp.ge.f32.partialorder %v701, 0.0
    %vm748 = vcmp.ge.f32.partialorder %v706, 0.0
    %vm749 = vcmp.ge.f32.partialorder %v711, 0.0
    %vm750 = vcmp.ge.f32.partialorder %v716, 0.0
    %v751 = vmul.f32 %v496, 0.2
    %v752 = vmul.f32 %v501, 0.2
    %v753 = vmul.f32 %v506, 0.2
    %v754 = vmul.f32 %v511, 0.2
    %v755 = vmul.f32 %v516, 0.2
    %v756 = vmul.f32 %v521, 0.2
    %v757 = vmul.f32 %v526, 0.2
    %v758 = vmul.f32 %v531, 0.2
    %v759 = vmul.f32 %v536, 0.2
    %v760 = vmul.f32 %v541, 0.2
    %v761 = vmul.f32 %v546, 0.2
    %v762 = vmul.f32 %v551, 0.2
    %v763 = vmul.f32 %v556, 0.2
    %v764 = vmul.f32 %v561, 0.2
    %v765 = vmul.f32 %v566, 0.2
    %v766 = vmul.f32 %v571, 0.2
    %v767 = vmul.f32 %v641, 0.2
    %v768 = vmul.f32 %v646, 0.2
    %v769 = vmul.f32 %v651, 0.2
    %v770 = vmul.f32 %v656, 0.2
    %v771 = vmul.f32 %v661, 0.2
    %v772 = vmul.f32 %v666, 0.2
    %v773 = vmul.f32 %v671, 0.2
    %v774 = vmul.f32 %v676, 0.2
    %v775 = vmul.f32 %v681, 0.2
    %v776 = vmul.f32 %v686, 0.2
    %v777 = vmul.f32 %v691, 0.2
    %v778 = vmul.f32 %v696, 0.2
    %v779 = vmul.f32 %v701, 0.2
    %v780 = vmul.f32 %v706, 0.2
    %v781 = vmul.f32 %v711, 0.2
    %v782 = vmul.f32 %v716, 0.2
    %v783 = vsel %vm719, %v496, %v751
    %v784 = vsel %vm720, %v501, %v752
    %v785 = vsel %vm721, %v506, %v753
    %v786 = vsel %vm722, %v511, %v754
    %v787 = vsel %vm723, %v516, %v755
    %v788 = vsel %vm724, %v521, %v756
    %v789 = vsel %vm725, %v526, %v757
    %v790 = vsel %vm726, %v531, %v758
    %v791 = vsel %vm727, %v536, %v759
    %v792 = vsel %vm728, %v541, %v760
    %v793 = vsel %vm729, %v546, %v761
    %v794 = vsel %vm730, %v551, %v762
    %v795 = vsel %vm731, %v556, %v763
    %v796 = vsel %vm732, %v561, %v764
    %v797 = vsel %vm733, %v566, %v765
    %v798 = vsel %vm734, %v571, %v766
    %v799 = vsel %vm735, %v641, %v767
    %v800 = vsel %vm736, %v646, %v768
    %v801 = vsel %vm737, %v651, %v769
    %v802 = vsel %vm738, %v656, %v770
    %v803 = vsel %vm739, %v661, %v771
    %v804 = vsel %vm740, %v666, %v772
    %v805 = vsel %vm741, %v671, %v773
    %v806 = vsel %vm742, %v676, %v774
    %v807 = vsel %vm743, %v681, %v775
    %v808 = vsel %vm744, %v686, %v776
    %v809 = vsel %vm745, %v691, %v777
    %v810 = vsel %vm746, %v696, %v778
    %v811 = vsel %vm747, %v701, %v779
    %v812 = vsel %vm748, %v706, %v780
    %v813 = vsel %vm749, %v711, %v781
    %v814 = vsel %vm750, %v716, %v782
    %815 = vst [vmem:[#allocation9] sm:$0xff] %v783
    %816 = vst [vmem:[#allocation9 + $0x8] sm:$0xff] %v784
    %817 = vst [vmem:[#allocation9 + $0x10] sm:$0xff] %v785
    %818 = vst [vmem:[#allocation9 + $0x18] sm:$0xff] %v786
    %819 = vst [vmem:[#allocation9 + $0x20] sm:$0xff] %v787
    %820 = vst [vmem:[#allocation9 + $0x28] sm:$0xff] %v788
    %821 = vst [vmem:[#allocation9 + $0x30] sm:$0xff] %v789
    %822 = vst [vmem:[#allocation9 + $0x38] sm:$0xff] %v790
    %823 = vst [vmem:[#allocation9 + $0x40] sm:$0xff] %v791
    %824 = vst [vmem:[#allocation9 + $0x48] sm:$0xff] %v792
    %825 = vst [vmem:[#allocation9 + $0x50] sm:$0xff] %v793
    %826 = vst [vmem:[#allocation9 + $0x58] sm:$0xff] %v794
    %827 = vst [vmem:[#allocation9 + $0x60] sm:$0xff] %v795
    %828 = vst [vmem:[#allocation9 + $0x68] sm:$0xff] %v796
    %829 = vst [vmem:[#allocation9 + $0x70] sm:$0xff] %v797
    %830 = vst [vmem:[#allocation9 + $0x78] sm:$0xff] %v798
    %831 = vst [vmem:[#allocation9 + $0x80] sm:$0xff] %v799
    %832 = vst [vmem:[#allocation9 + $0x88] sm:$0xff] %v800
    %833 = vst [vmem:[#allocation9 + $0x90] sm:$0xff] %v801
    %834 = vst [vmem:[#allocation9 + $0x98] sm:$0xff] %v802
    %835 = vst [vmem:[#allocation9 + $0xa0] sm:$0xff] %v803
    %836 = vst [vmem:[#allocation9 + $0xa8] sm:$0xff] %v804
    %837 = vst [vmem:[#allocation9 + $0xb0] sm:$0xff] %v805
    %838 = vst [vmem:[#allocation9 + $0xb8] sm:$0xff] %v806
    %839 = vst [vmem:[#allocation9 + $0xc0] sm:$0xff] %v807
    %840 = vst [vmem:[#allocation9 + $0xc8] sm:$0xff] %v808
    %841 = vst [vmem:[#allocation9 + $0xd0] sm:$0xff] %v809
    %842 = vst [vmem:[#allocation9 + $0xd8] sm:$0xff] %v810
    %843 = vst [vmem:[#allocation9 + $0xe0] sm:$0xff] %v811
    %844 = vst [vmem:[#allocation9 + $0xe8] sm:$0xff] %v812
    %845 = vst [vmem:[#allocation9 + $0xf0] sm:$0xff] %v813
    %846 = vst [vmem:[#allocation9 + $0xf8] sm:$0xff] %v814
    // Predicated region
    $region30: #{tpu_custom_call.1} parent=1 // pred_check
      _
    $region31: #{tpu_custom_call.1} parent=1 // pred_check_branch
      %848 = sbr.rel (0) target = $region33
    $region32: #{tpu_custom_call.1} parent=1 // pred_region
      %s850 = ssub.s32 4096, 4096
      %851 = vsyncadd [#allocation5], %s850
      %s852 = sshll.u32 [#allocation9], 4
      %s853 = int_to_ptr.vmem [resolvable:$true] %s852
      %858 = dma.vmem_to_hbm [thread:$0]  %s853, 4096, %s3, [#allocation5], 128, 128, 8
    $region33: #{tpu_custom_call.1} parent=1 // pred_fallthru
      _
    // Predicated region
    $region34: #{tpu_custom_call.1} parent=1 // pred_check
      _
    $region35: #{tpu_custom_call.1} parent=1 // pred_check_branch
      %860 = sbr.rel (0) target = $region37
    $region36: #{tpu_custom_call.1} parent=1 // pred_region
      %861 = dma.done [#allocation5], 4096
    $region37: #{tpu_custom_call.1} parent=1 // pred_fallthru
      _
    %862 = vsyncpa [#allocation4], 1
    %863 = vsyncpa [#allocation7], 1
    %864 = vsyncpa [#allocation5], 1

</llo_original>
